<compile_context>
chip_gen: v5e
topology: v5e:2x2
jax: 0.10.0
libtpu: 0.0.40
codegen_flags: <defaults>
</compile_context>

<pallas_src>
import jax
import jax.numpy as jnp
from jax.experimental import pallas as pl
from jax.experimental.pallas import tpu as pltpu


def nw_kernel(q_ref, k_ref, v_ref, w_ref, o_ref):
    # q_ref: (T, 1) VMEM, k_ref/v_ref: (T, m) VMEM, w_ref: (1, 1) SMEM scalar.
    q = q_ref[...].astype(jnp.float32)          # (T, 1)
    k = k_ref[...].astype(jnp.float32)          # (T, m)
    v = v_ref[...].astype(jnp.float32)          # (T, m)
    w = w_ref[0, 0]                             # scalar (f32, from SMEM)

    c = -0.5 * w * w                            # scalar-slot hoist: -w^2/2
    d = q - k                                   # broadcast == repeat_interleave
    scores = (c * d) * d                        # (T, m), scores <= 0

    # numerically-stable softmax over the m (lane) axis, normalization folded
    # into the final per-row scale.
    row_max = jnp.max(scores, axis=1, keepdims=True)
    p = jnp.exp(scores - row_max)                       # (T, m)
    denom = jnp.sum(p, axis=1, keepdims=True)           # (T, 1)
    num = jnp.sum(p * v, axis=1, keepdims=True)         # (T, 1)
    o_ref[...] = (num * pl.reciprocal(denom, approx=True)).astype(o_ref.dtype)


def _choose_tile_n(n, m, itemsize):
    # Budget ~8 MiB for the double-buffered keys+values tiles: safe under the
    # v5e 16 MiB scoped-VMEM default and far under v7x's 64 MiB physical VMEM.
    budget = 8 * 1024 * 1024
    per_row = 2 * 2 * m * itemsize              # (k + v) x 2 pipeline buffers
    tile = budget // max(per_row, 1)
    tile = min(tile, 1024)                      # diminishing returns past ~1K rows
    n_up = ((n + 7) // 8) * 8
    tile = min(tile, n_up)
    tile = max((tile // 8) * 8, 8)              # sublane-aligned
    return int(tile)


def nw_kernel_regression(queries, keys, values, w, tile_n=None):
    """queries: (n,), keys: (n, m), values: (n, m), w: (1,) -> (n,) float32."""
    n, m = keys.shape
    itemsize = jnp.dtype(keys.dtype).itemsize
    if tile_n is None:
        tile_n = _choose_tile_n(n, m, itemsize)
    tile_n = max(8, (int(tile_n) // 8) * 8)

    n_pad = ((n + tile_n - 1) // tile_n) * tile_n
    pad = n_pad - n

    q2 = queries.reshape(n, 1)
    k2 = keys
    v2 = values
    if pad:
        # Zero padding is benign: scores are all 0 -> uniform softmax over
        # zero values -> output 0 in the padded rows (sliced off below).
        q2 = jnp.pad(q2, ((0, pad), (0, 0)))
        k2 = jnp.pad(k2, ((0, pad), (0, 0)))
        v2 = jnp.pad(v2, ((0, pad), (0, 0)))
    w2 = w.reshape(1, 1).astype(jnp.float32)

    grid = (n_pad // tile_n,)
    out = pl.pallas_call(
        nw_kernel,
        out_shape=jax.ShapeDtypeStruct((n_pad, 1), jnp.float32),
        grid=grid,
        in_specs=[
            pl.BlockSpec((tile_n, 1), lambda i: (i, 0)),
            pl.BlockSpec((tile_n, m), lambda i: (i, 0)),
            pl.BlockSpec((tile_n, m), lambda i: (i, 0)),
            pl.BlockSpec(memory_space=pltpu.SMEM),
        ],
        out_specs=pl.BlockSpec((tile_n, 1), lambda i: (i, 0)),
        compiler_params=pltpu.CompilerParams(
            dimension_semantics=("parallel",),
            vmem_limit_bytes=32 * 1024 * 1024,
        ),
    )(q2, k2, v2, w2)
    return out[:n].reshape(-1)


def nw_reference(queries, keys, values, w):
    """Pure-JAX reference mirroring the PyTorch forward exactly."""
    n, m = keys.shape
    q = jnp.repeat(queries, m).reshape(-1, m).astype(jnp.float32)
    scores = -((q - keys.astype(jnp.float32)) * w[0]) ** 2 / 2.0
    attn = jax.nn.softmax(scores, axis=1)
    return jnp.einsum("nm,nm->n", attn, values.astype(jnp.float32))


if __name__ == "__main__":
    key = jax.random.PRNGKey(0)
    k_q, k_k, k_v, k_w = jax.random.split(key, 4)

    # Small case matching the module's typical use: n queries, m pairs each.
    n, m = 8, 16
    queries = jax.random.normal(k_q, (n,), dtype=jnp.float32)
    keys = jax.random.normal(k_k, (n, m), dtype=jnp.float32)
    values = jax.random.normal(k_v, (n, m), dtype=jnp.float32)
    w = jax.random.uniform(k_w, (1,), dtype=jnp.float32)  # stand-in for nn.Parameter

    out = jax.block_until_ready(nw_kernel_regression(queries, keys, values, w))
    ref = nw_reference(queries, keys, values, w)
    assert out.shape == (n,)
    assert jnp.allclose(out, ref, atol=2e-3, rtol=2e-3), (out, ref)

    # Larger case exercising the n-grid, double buffering and padding path.
    n2, m2 = 300, 16
    k_q2, k_k2, k_v2 = jax.random.split(k_q, 3)
    queries2 = jax.random.normal(k_q2, (n2,), dtype=jnp.float32)
    keys2 = jax.random.normal(k_k2, (n2, m2), dtype=jnp.float32)
    values2 = jax.random.normal(k_v2, (n2, m2), dtype=jnp.float32)

    out2 = jax.block_until_ready(
        nw_kernel_regression(queries2, keys2, values2, w, tile_n=64)
    )
    ref2 = nw_reference(queries2, keys2, values2, w)
    assert out2.shape == (n2,)
    assert jnp.allclose(out2, ref2, atol=2e-3, rtol=2e-3), (out2, ref2)

    print("KERNEL_OK")
</pallas_src>

<mosaic_0001>
module attributes {stable_mosaic.version = 11 : i64} {
  func.func @nw_kernel(%arg0: i32, %arg1: memref<8x1xf32, #tpu.memory_space<vmem>>, %arg2: memref<8x16xf32, #tpu.memory_space<vmem>>, %arg3: memref<8x16xf32, #tpu.memory_space<vmem>>, %arg4: memref<1x1xf32, #tpu.memory_space<smem>>, %arg5: memref<8x1xf32, #tpu.memory_space<vmem>>) attributes {dimension_semantics = [#tpu.dimension_semantics<parallel>], iteration_bounds = array<i64: 1>, scalar_prefetch = 0 : i64, scratch_operands = 0 : i64, tpu.core_type = #tpu.core_type<tc>, window_params = [{transform_indices = @transform_0, window_bounds = array<i64: 8, 1>}, {transform_indices = @transform_1, window_bounds = array<i64: 8, 16>}, {transform_indices = @transform_2, window_bounds = array<i64: 8, 16>}, {transform_indices = @transform_3, window_bounds = array<i64: 1, 1>}, {transform_indices = @transform_4, window_bounds = array<i64: 8, 1>}]} {
    %c0 = arith.constant 0 : index
    %c0_0 = arith.constant 0 : index
    %0 = vector.load %arg1[%c0, %c0_0] : memref<8x1xf32, #tpu.memory_space<vmem>>, vector<8x1xf32>
    %c0_1 = arith.constant 0 : index
    %c0_2 = arith.constant 0 : index
    %1 = vector.load %arg2[%c0_1, %c0_2] : memref<8x16xf32, #tpu.memory_space<vmem>>, vector<8x16xf32>
    %c0_3 = arith.constant 0 : index
    %c0_4 = arith.constant 0 : index
    %2 = vector.load %arg3[%c0_3, %c0_4] : memref<8x16xf32, #tpu.memory_space<vmem>>, vector<8x16xf32>
    %c0_5 = arith.constant 0 : index
    %c0_6 = arith.constant 0 : index
    %3 = memref.load %arg4[%c0_5, %c0_6] : memref<1x1xf32, #tpu.memory_space<smem>>
    %cst = arith.constant -5.000000e-01 : f32
    %4 = arith.mulf %cst, %3 : f32
    %5 = arith.mulf %4, %3 : f32
    %6 = vector.broadcast %0 : vector<8x1xf32> to vector<8x16xf32>
    %7 = arith.subf %6, %1 : vector<8x16xf32>
    %8 = vector.broadcast %5 : f32 to vector<8x16xf32>
    %9 = arith.mulf %8, %7 : vector<8x16xf32>
    %10 = arith.mulf %9, %7 : vector<8x16xf32>
    %cst_7 = arith.constant dense<0xFF800000> : vector<8xf32>
    %11 = vector.multi_reduction <maximumf>, %10, %cst_7 [1] : vector<8x16xf32> to vector<8xf32>
    %12 = vector.shape_cast %11 : vector<8xf32> to vector<8x1xf32>
    %13 = vector.broadcast %12 : vector<8x1xf32> to vector<8x16xf32>
    %14 = arith.subf %10, %13 : vector<8x16xf32>
    %15 = math.exp %14 : vector<8x16xf32>
    %cst_8 = arith.constant dense<0.000000e+00> : vector<8xf32>
    %16 = vector.multi_reduction <add>, %15, %cst_8 [1] : vector<8x16xf32> to vector<8xf32>
    %17 = vector.shape_cast %16 : vector<8xf32> to vector<8x1xf32>
    %18 = arith.mulf %15, %2 : vector<8x16xf32>
    %cst_9 = arith.constant dense<0.000000e+00> : vector<8xf32>
    %19 = vector.multi_reduction <add>, %18, %cst_9 [1] : vector<8x16xf32> to vector<8xf32>
    %20 = vector.shape_cast %19 : vector<8xf32> to vector<8x1xf32>
    %21 = tpu.reciprocal %17 {approx = true} : vector<8x1xf32> -> vector<8x1xf32>
    %22 = arith.mulf %20, %21 : vector<8x1xf32>
    %c0_10 = arith.constant 0 : index
    %c0_11 = arith.constant 0 : index
    %23 = vector.load %arg5[%c0_10, %c0_11] : memref<8x1xf32, #tpu.memory_space<vmem>>, vector<8x1xf32>
    tpu.vector_store %arg5[%c0_10, %c0_11], %22 {strides = array<i32>} : memref<8x1xf32, #tpu.memory_space<vmem>>, vector<8x1xf32>,
    return
  }
  func.func @transform_0(%arg0: i32) -> (i32, i32) {
    %c0_i32 = arith.constant 0 : i32
    %c0_i32_0 = arith.constant 0 : i32
    return %arg0, %c0_i32 : i32, i32
  }
  func.func @transform_1(%arg0: i32) -> (i32, i32) {
    %c0_i32 = arith.constant 0 : i32
    %c0_i32_0 = arith.constant 0 : i32
    return %arg0, %c0_i32 : i32, i32
  }
  func.func @transform_2(%arg0: i32) -> (i32, i32) {
    %c0_i32 = arith.constant 0 : i32
    %c0_i32_0 = arith.constant 0 : i32
    return %arg0, %c0_i32 : i32, i32
  }
  func.func @transform_3(%arg0: i32) -> (i32, i32) {
    %c0_i32 = arith.constant 0 : i32
    %c0_i32_0 = arith.constant 0 : i32
    %c0_i32_1 = arith.constant 0 : i32
    return %c0_i32, %c0_i32_0 : i32, i32
  }
  func.func @transform_4(%arg0: i32) -> (i32, i32) {
    %c0_i32 = arith.constant 0 : i32
    %c0_i32_0 = arith.constant 0 : i32
    return %arg0, %c0_i32 : i32, i32
  }
}

</mosaic_0001>

<llo_original>
// kernel: tpu_custom_call.1
$region0: #{tpu_custom_call.1}
  #allocation0 [shape = 'u32[]', space=smem, size = 0x4, offset = 0x4, fixed_abs, tag = 'smem constant byte address 0x4 - core index']
  #allocation1 [shape = 'u32[72,128]{1,0:T(1,128)}', space=vmem, size = 0x9000, scoped, tag = 'internal scratch']
  #allocation2 [shape = 'f32[1,1]{1,0:T(1,128)S(6)}', space=smem, size = 0x200, scoped, tag = 'scoped memory for tpu_custom_call.1']
  %s0 = inlined_call_operand.vmem [shape: f32[8,1], index: 0, kind: input, shape index: {}]
  %s1 = inlined_call_operand.vmem [shape: f32[8,16], index: 1, kind: input, shape index: {}]
  %s2 = inlined_call_operand.hbm [shape: f32[8,16], index: 2, kind: input, shape index: {}]
  %s3 = inlined_call_operand.<no memory space> [shape: f32[1,1], index: 3, kind: input, shape index: {}]
  %s4 = inlined_call_operand.vmem [shape: f32[8,1], index: 4, kind: output, shape index: {}]
  %s5 = sld [smem:[#allocation0]]
  $region30: #{tpu_custom_call.1} parent=0
    _
  %s7 = ssub.s32 1, %s5
  %s8 = scalar_select 0, %s7, %s5
  %9 = sst [smem:[#allocation2]] %s3
  $region1: #{tpu_custom_call.1} parent=0
    #allocation3 [shape = 'u8[4096]{0}', space=vmem, size = 0x1000, scoped, tag = 'input window, operand 2, single buffered']
    #allocation4 [shape = 's32[1]{0}', space=sflag, size = 0x4, scoped, tag = 'scoped memory for tpu_custom_call.1']
    %10 = vsyncpa [#allocation4], 0
    // Predicated region
    $region2: #{tpu_custom_call.1} parent=1 // pred_check
      _
    $region3: #{tpu_custom_call.1} parent=1 // pred_check_branch
      %12 = sbr.rel (0) target = $region5
    $region4: #{tpu_custom_call.1} parent=1 // pred_region
      _
    $region5: #{tpu_custom_call.1} parent=1 // pred_fallthru
      _
    // Predicated region
    $region6: #{tpu_custom_call.1} parent=1 // pred_check
      _
    $region7: #{tpu_custom_call.1} parent=1 // pred_check_branch
      %14 = sbr.rel (0) target = $region9
    $region8: #{tpu_custom_call.1} parent=1 // pred_region
      _
    $region9: #{tpu_custom_call.1} parent=1 // pred_fallthru
      _
    // Predicated region
    $region10: #{tpu_custom_call.1} parent=1 // pred_check
      _
    $region11: #{tpu_custom_call.1} parent=1 // pred_check_branch
      %16 = sbr.rel (0) target = $region13
    $region12: #{tpu_custom_call.1} parent=1 // pred_region
      %18 = vsyncadd [#allocation4], 0
      %s20 = sshll.u32 %s2, 4
      %s21 = int_to_ptr.hbm [resolvable:$true] %s20
      %s22 = sshll.u32 [#allocation3], 4
      %s23 = int_to_ptr.vmem [resolvable:$true] %s22
      %25 = dma.hbm_to_vmem [thread:$0]  %s21, 128, %s23, [#allocation4]
    $region13: #{tpu_custom_call.1} parent=1 // pred_fallthru
      _
    // Predicated region
    $region14: #{tpu_custom_call.1} parent=1 // pred_check
      _
    $region15: #{tpu_custom_call.1} parent=1 // pred_check_branch
      %27 = sbr.rel (0) target = $region17
    $region16: #{tpu_custom_call.1} parent=1 // pred_region
      _
    $region17: #{tpu_custom_call.1} parent=1 // pred_fallthru
      _
    // Predicated region
    $region18: #{tpu_custom_call.1} parent=1 // pred_check
      _
    $region19: #{tpu_custom_call.1} parent=1 // pred_check_branch
      %29 = sbr.rel (0) target = $region21
    $region20: #{tpu_custom_call.1} parent=1 // pred_region
      %31 = dma.done [#allocation4], 128
    $region21: #{tpu_custom_call.1} parent=1 // pred_fallthru
      _
    %v32 = vld [vmem:[%s0] sm:$0xff]
    %v33 = vld [vmem:[%s1] sm:$0xff]
    %v34 = vld [vmem:[#allocation3] sm:$0xff]
    %s35 = sld [smem:[#allocation2]]
    %s36 = smul.f32 %s35, -0.5
    %s37 = smul.f32 %s36, %s35
    %39 = vset.pattern.permute.xlu0 0
    %40 = vperm.xlu0 %39, %v32
    %v41 = vpop.permute.xlu0 %40
    %v43 = vsub.f32 %v41, %v33
    %v44 = vstv %s37
    %v45 = vmul.f32 %v44, %v43
    %v46 = vmul.f32 %v45, %v43
    %vm47 = vcmask 130048
    %v48 = vsel %vm47, %v46, -inf
    %49 = vmax.xlane.f32.xlu0 %v48
    %v50 = vpop.xlane.xlu0 %49
    %v51 = vsub.f32 %v46, %v50
    %v52 = vmul.f32 %v51, 1.442695
    %v53 = vpow.pop %v52
    %v54 = vsel %vm47, %v53, 0.0
    %55 = vadd.xlane.f32.xlu0 %v54
    %v56 = vpop.xlane.xlu0 %55
    %v57 = vmul.f32 %v53, %v34
    %v58 = vsel %vm47, %v57, 0.0
    %59 = vadd.xlane.f32.xlu0 %v58
    %v60 = vpop.xlane.xlu0 %59
    %v61 = vrcp.pop %v56
    %v62 = vmul.f32 %v60, %v61
    %vm63 = vcmask 7168
    %64 = vst.msk [vmem:[%s4] sm:$0xff] %vm63, %v62
    // Predicated region
    $region22: #{tpu_custom_call.1} parent=1 // pred_check
      _
    $region23: #{tpu_custom_call.1} parent=1 // pred_check_branch
      %66 = sbr.rel (0) target = $region25
    $region24: #{tpu_custom_call.1} parent=1 // pred_region
      _
    $region25: #{tpu_custom_call.1} parent=1 // pred_fallthru
      _
    // Predicated region
    $region26: #{tpu_custom_call.1} parent=1 // pred_check
      _
    $region27: #{tpu_custom_call.1} parent=1 // pred_check_branch
      %68 = sbr.rel (0) target = $region29
    $region28: #{tpu_custom_call.1} parent=1 // pred_region
      _
    $region29: #{tpu_custom_call.1} parent=1 // pred_fallthru
      _
    %69 = vsyncpa [#allocation4], 1

</llo_original>
